<compile_context>
chip_gen: v6e
topology: v6e:2x2x1
jax: 0.10.0
libtpu: 0.0.40
codegen_flags: <defaults>
</compile_context>

<pallas_src>
import jax
import jax.numpy as jnp
from jax.experimental import pallas as pl
from jax.experimental.pallas import tpu as pltpu

LEAKY_SLOPE = 0.01   # F.leaky_relu default negative_slope
BN_EPS = 1e-5        # nn.BatchNorm1d default eps
LANE = 128
NEG_LARGE = -1e30    # bias value on padded softmax lanes -> exp() == 0


def _round_up(x, m):
    return (x + m - 1) // m * m


def _cdiv(a, b):
    return (a + b - 1) // b


# --------------------------------------------------------------------------
# Kernel: whole Actor forward for one batch tile, weights VMEM-resident.
# --------------------------------------------------------------------------
def _actor_kernel(x_ref, w1_ref, wmid_ref, w5_ref, b_ref, out_ref):
    n_hidden = w1_ref.shape[1]
    n_out_pad = w5_ref.shape[1]

    def layer(h_bf16, w, b_row):
        # bf16 x bf16 -> f32 accumulate on the MXU; BN folded into w/b.
        z = jnp.dot(h_bf16, w, preferred_element_type=jnp.float32) + b_row
        # LeakyReLU (0 < slope < 1) == max(z, slope*z); cast once for next dot.
        return jnp.maximum(z, LEAKY_SLOPE * z).astype(jnp.bfloat16)

    h = layer(x_ref[...], w1_ref[...], b_ref[0:1, 0:n_hidden])
    h = layer(h, wmid_ref[0], b_ref[1:2, 0:n_hidden])
    h = layer(h, wmid_ref[1], b_ref[2:3, 0:n_hidden])
    h = layer(h, wmid_ref[2], b_ref[3:4, 0:n_hidden])

    # Final linear (lane-padded to 128) + row-wise softmax.
    logits = (jnp.dot(h, w5_ref[...], preferred_element_type=jnp.float32)
              + b_ref[4:5, 0:n_out_pad])
    m = jnp.max(logits, axis=-1, keepdims=True)
    e = jnp.exp(logits - m)
    d = jnp.sum(e, axis=-1, keepdims=True)
    r = pl.reciprocal(d, approx=True)      # EUP slot (otherwise idle)
    r = r * (2.0 - d * r)                  # one Newton step -> ~exact
    out_ref[...] = (e * r).astype(out_ref.dtype)


# --------------------------------------------------------------------------
# Wrapper
# --------------------------------------------------------------------------
def _pick_batch_tile(B, block_b):
    """Big tiles to amortize per-grid-step overhead; for large B keep the
    number of tiles even (>=2) so the 'parallel' batch axis can shard across
    v7x's two TensorCores."""
    if B <= block_b:
        return _round_up(B, 8)                 # single tile, minimal padding
    n_tiles = _cdiv(B, block_b)
    if n_tiles % 2:
        n_tiles += 1
    return _round_up(_cdiv(B, n_tiles), 8)


def _vmem_cap_bytes():
    """Leave headroom for compiler scratch/semaphores instead of claiming the
    whole physical VMEM (critical on v7x's 64 MiB)."""
    try:
        cap = int(pltpu.get_tpu_info().vmem_capacity_bytes) - (16 << 20)
    except Exception:
        cap = 48 << 20
    return max(cap, 32 << 20)


def actor_forward(x, params, *, block_b=512):
    """params = dict from fold_params(). Returns softmax probs (B, n_out)."""
    w1, wmid, w5, bias = params["w1"], params["wmid"], params["w5"], params["bias"]
    n_in, n_in_pad = params["n_in"], params["n_in_pad"]
    n_out, n_out_pad = params["n_out"], params["n_out_pad"]
    n_hidden = params["n_hidden"]

    B = x.shape[0]
    TB = _pick_batch_tile(B, block_b)
    Bpad = _round_up(B, TB)

    # bf16 input DMA (halves batch-scaling HBM read) + lane-dense n_in pad.
    x = x.astype(jnp.bfloat16)
    if Bpad != B or n_in_pad != n_in:
        x = jnp.pad(x, ((0, Bpad - B), (0, n_in_pad - n_in)))
    grid = (Bpad // TB,)

    tile_map = lambda i: (i, 0)             # batch-tiled arrays
    const2 = lambda i: (0, 0)               # resident params
    const3 = lambda i: (0, 0, 0)
    single = pl.Buffered(1)                 # constant index -> 1 buffer is enough

    in_specs = [
        pl.BlockSpec((TB, n_in_pad), tile_map),
        pl.BlockSpec(w1.shape, const2, pipeline_mode=single),
        pl.BlockSpec(wmid.shape, const3, pipeline_mode=single),
        pl.BlockSpec(w5.shape, const2, pipeline_mode=single),
        pl.BlockSpec(bias.shape, const2, pipeline_mode=single),
    ]
    out_spec = pl.BlockSpec((TB, n_out_pad), tile_map)

    # VMEM budget: double-buffered x/out tiles + single-buffered params
    # + activation headroom; capped with headroom for the compiler.
    tile_bytes = 2 * (TB * n_in_pad * 2 + TB * n_out_pad * 4)
    param_bytes = sum(int(a.size) * a.dtype.itemsize for a in (w1, wmid, w5, bias))
    act_bytes = TB * n_hidden * 8
    vmem_limit = tile_bytes + param_bytes + act_bytes + (2 << 20)
    vmem_limit = int(min(max(vmem_limit, 4 << 20), _vmem_cap_bytes()))

    out = pl.pallas_call(
        _actor_kernel,
        out_shape=jax.ShapeDtypeStruct((Bpad, n_out_pad), jnp.float32),
        grid=grid,
        in_specs=in_specs,
        out_specs=out_spec,
        compiler_params=pltpu.CompilerParams(
            dimension_semantics=("parallel",),
            vmem_limit_bytes=vmem_limit),
    )(x, w1, wmid, w5, bias)

    return out[:B, :n_out]


# --------------------------------------------------------------------------
# Parameter construction (mirrors the PyTorch module, eval mode)
# --------------------------------------------------------------------------
def init_actor_params(key, n_in, n_out, n_hidden):
    """Raw params: Xavier-uniform weights ([in,out]), default Linear bias,
    BatchNorm1d gamma=1, beta=0, running_mean=0, running_var=1."""
    dims = [n_in, n_hidden, n_hidden, n_hidden, n_hidden, n_out]
    keys = jax.random.split(key, 10)
    raw = []
    for i in range(5):
        fan_in, fan_out = dims[i], dims[i + 1]
        wkey, bkey = keys[2 * i], keys[2 * i + 1]
        bound_w = (6.0 / (fan_in + fan_out)) ** 0.5
        w = jax.random.uniform(wkey, (fan_in, fan_out), jnp.float32,
                               minval=-bound_w, maxval=bound_w)
        bound_b = 1.0 / (fan_in ** 0.5)
        b = jax.random.uniform(bkey, (fan_out,), jnp.float32,
                               minval=-bound_b, maxval=bound_b)
        layer = {"w": w, "b": b}
        if i < 4:
            layer.update(gamma=jnp.ones((fan_out,), jnp.float32),
                         beta=jnp.zeros((fan_out,), jnp.float32),
                         mean=jnp.zeros((fan_out,), jnp.float32),
                         var=jnp.ones((fan_out,), jnp.float32))
        raw.append(layer)
    return raw


def fold_params(raw, weight_dtype=jnp.bfloat16):
    """Fold eval-mode BN into the Linears, pad n_in and n_out to 128 lanes,
    stack w2..w4 into one operand and all biases into one (5, Hmax) operand,
    cast weights to bf16 (biases stay f32)."""
    ws, bs = [], []
    for i, layer in enumerate(raw):
        w, b = layer["w"], layer["b"]
        if i < 4:
            scale = layer["gamma"] / jnp.sqrt(layer["var"] + BN_EPS)
            shift = layer["beta"] - layer["mean"] * scale
            w = w * scale[None, :]
            b = b * scale + shift
        ws.append(w)
        bs.append(b)

    n_in, n_hidden = ws[0].shape
    n_out = ws[4].shape[1]
    n_in_pad = _round_up(n_in, LANE)
    n_out_pad = _round_up(n_out, LANE)
    h_max = max(n_hidden, n_out_pad)

    w1 = jnp.pad(ws[0], ((0, n_in_pad - n_in), (0, 0)))          # zero rows
    wmid = jnp.stack(ws[1:4], axis=0)                            # (3, H, H)
    w5 = jnp.pad(ws[4], ((0, 0), (0, n_out_pad - n_out)))        # zero cols

    bias = jnp.zeros((5, h_max), jnp.float32)
    for i in range(4):
        bias = bias.at[i, :n_hidden].set(bs[i].astype(jnp.float32))
    b5 = jnp.full((n_out_pad,), NEG_LARGE, jnp.float32)
    b5 = b5.at[:n_out].set(bs[4].astype(jnp.float32))
    bias = bias.at[4, :n_out_pad].set(b5)

    return dict(w1=w1.astype(weight_dtype),
                wmid=wmid.astype(weight_dtype),
                w5=w5.astype(weight_dtype),
                bias=bias,
                n_in=n_in, n_in_pad=n_in_pad,
                n_out=n_out, n_out_pad=n_out_pad,
                n_hidden=n_hidden)


# --------------------------------------------------------------------------
# References for verification
# --------------------------------------------------------------------------
def actor_reference(x, raw):
    """Full-f32 PyTorch-eval semantics."""
    h = x
    for i, layer in enumerate(raw):
        z = h @ layer["w"] + layer["b"]
        if i < 4:
            scale = layer["gamma"] / jnp.sqrt(layer["var"] + BN_EPS)
            z = (z - layer["mean"]) * scale + layer["beta"]
            h = jnp.where(z > 0, z, LEAKY_SLOPE * z)
        else:
            return jax.nn.softmax(z, axis=-1)


def actor_reference_folded(x, params):
    """Same folded/bf16 numerics as the kernel (tight comparison)."""
    n_in, n_in_pad = params["n_in"], params["n_in_pad"]
    n_out, n_out_pad = params["n_out"], params["n_out_pad"]
    n_hidden = params["n_hidden"]
    w1, wmid, w5, bias = params["w1"], params["wmid"], params["w5"], params["bias"]

    h = jnp.pad(x.astype(jnp.bfloat16), ((0, 0), (0, n_in_pad - n_in)))

    def layer(h, w, b_row):
        z = jnp.dot(h, w, preferred_element_type=jnp.float32) + b_row
        return jnp.maximum(z, LEAKY_SLOPE * z).astype(jnp.bfloat16)

    h = layer(h, w1, bias[0:1, :n_hidden])
    h = layer(h, wmid[0], bias[1:2, :n_hidden])
    h = layer(h, wmid[1], bias[2:3, :n_hidden])
    h = layer(h, wmid[2], bias[3:4, :n_hidden])
    logits = (jnp.dot(h, w5, preferred_element_type=jnp.float32)
              + bias[4:5, :n_out_pad])
    return jax.nn.softmax(logits, axis=-1)[:, :n_out]


if __name__ == "__main__":
    # Small shapes consistent with the MLP forward.
    B, N_IN, N_OUT, N_HID = 8, 64, 8, 256

    key = jax.random.PRNGKey(0)
    pkey, xkey = jax.random.split(key)
    raw = init_actor_params(pkey, N_IN, N_OUT, N_HID)
    params = fold_params(raw)
    x = jax.random.normal(xkey, (B, N_IN), jnp.float32)

    prob = jax.block_until_ready(actor_forward(x, params))

    assert prob.shape == (B, N_OUT)
    assert jnp.allclose(jnp.sum(prob, axis=-1), 1.0, atol=1e-4)
    # Tight check against a reference with identical folded/bf16 numerics.
    ref_q = actor_reference_folded(x, params)
    assert jnp.allclose(prob, ref_q, atol=1e-3, rtol=5e-3)
    # Loose sanity check against the full-f32 PyTorch-eval reference
    # (difference is bf16 weight/input/activation quantization only).
    ref_f32 = actor_reference(x, raw)
    assert jnp.allclose(prob, ref_f32, atol=7e-2)

    print("KERNEL_OK")
</pallas_src>

<mosaic_0001>
module attributes {stable_mosaic.version = 11 : i64} {
  func.func @_actor_kernel(%arg0: i32, %arg1: memref<8x128xbf16, #tpu.memory_space<vmem>>, %arg2: memref<128x256xbf16, #tpu.memory_space<vmem>>, %arg3: memref<3x256x256xbf16, #tpu.memory_space<vmem>>, %arg4: memref<256x128xbf16, #tpu.memory_space<vmem>>, %arg5: memref<5x256xf32, #tpu.memory_space<vmem>>, %arg6: memref<8x128xf32, #tpu.memory_space<vmem>>) attributes {dimension_semantics = [#tpu.dimension_semantics<parallel>], iteration_bounds = array<i64: 1>, scalar_prefetch = 0 : i64, scratch_operands = 0 : i64, tpu.core_type = #tpu.core_type<tc>, window_params = [{transform_indices = @transform_0, window_bounds = array<i64: 8, 128>}, {pipeline_mode = #tpu.pipeline_mode<synchronous>, transform_indices = @transform_1, window_bounds = array<i64: 128, 256>}, {pipeline_mode = #tpu.pipeline_mode<synchronous>, transform_indices = @transform_2, window_bounds = array<i64: 3, 256, 256>}, {pipeline_mode = #tpu.pipeline_mode<synchronous>, transform_indices = @transform_3, window_bounds = array<i64: 256, 128>}, {pipeline_mode = #tpu.pipeline_mode<synchronous>, transform_indices = @transform_4, window_bounds = array<i64: 5, 256>}, {transform_indices = @transform_5, window_bounds = array<i64: 8, 128>}]} {
    %c0 = arith.constant 0 : index
    %c0_0 = arith.constant 0 : index
    %0 = vector.load %arg1[%c0, %c0_0] : memref<8x128xbf16, #tpu.memory_space<vmem>>, vector<8x128xbf16>
    %c0_1 = arith.constant 0 : index
    %c0_2 = arith.constant 0 : index
    %1 = vector.load %arg2[%c0_1, %c0_2] : memref<128x256xbf16, #tpu.memory_space<vmem>>, vector<128x256xbf16>
    %c0_3 = arith.constant 0 : index
    %c0_4 = arith.constant 0 : index
    %2 = vector.load %arg5[%c0_3, %c0_4] : memref<5x256xf32, #tpu.memory_space<vmem>>, vector<1x256xf32>
    %cst = arith.constant dense<0.000000e+00> : vector<8x256xf32>
    %3 = tpu.matmul %0, %1, %cst {dimension_numbers = #tpu.dot_dimension_numbers<[1], [0], [0], [1], [0, 0, 1, 1], [], []>} : vector<8x128xbf16>, vector<128x256xbf16>, vector<8x256xf32> -> vector<8x256xf32>
    %4 = vector.broadcast %2 : vector<1x256xf32> to vector<8x256xf32>
    %5 = arith.addf %3, %4 : vector<8x256xf32>
    %cst_5 = arith.constant 0.00999999977 : f32
    %6 = vector.broadcast %cst_5 : f32 to vector<8x256xf32>
    %7 = arith.mulf %6, %5 : vector<8x256xf32>
    %8 = arith.maximumf %5, %7 : vector<8x256xf32>
    %9 = arith.truncf %8 : vector<8x256xf32> to vector<8x256xbf16>
    %c0_6 = arith.constant 0 : index
    %c0_7 = arith.constant 0 : index
    %c0_8 = arith.constant 0 : index
    %10 = vector.load %arg3[%c0_6, %c0_7, %c0_8] : memref<3x256x256xbf16, #tpu.memory_space<vmem>>, vector<1x256x256xbf16>
    %11 = vector.shape_cast %10 : vector<1x256x256xbf16> to vector<256x256xbf16>
    %c1 = arith.constant 1 : index
    %c0_9 = arith.constant 0 : index
    %12 = vector.load %arg5[%c1, %c0_9] : memref<5x256xf32, #tpu.memory_space<vmem>>, vector<1x256xf32>
    %cst_10 = arith.constant dense<0.000000e+00> : vector<8x256xf32>
    %13 = tpu.matmul %9, %11, %cst_10 {dimension_numbers = #tpu.dot_dimension_numbers<[1], [0], [0], [1], [0, 0, 1, 1], [], []>} : vector<8x256xbf16>, vector<256x256xbf16>, vector<8x256xf32> -> vector<8x256xf32>
    %14 = vector.broadcast %12 : vector<1x256xf32> to vector<8x256xf32>
    %15 = arith.addf %13, %14 : vector<8x256xf32>
    %cst_11 = arith.constant 0.00999999977 : f32
    %16 = vector.broadcast %cst_11 : f32 to vector<8x256xf32>
    %17 = arith.mulf %16, %15 : vector<8x256xf32>
    %18 = arith.maximumf %15, %17 : vector<8x256xf32>
    %19 = arith.truncf %18 : vector<8x256xf32> to vector<8x256xbf16>
    %c1_12 = arith.constant 1 : index
    %c0_13 = arith.constant 0 : index
    %c0_14 = arith.constant 0 : index
    %20 = vector.load %arg3[%c1_12, %c0_13, %c0_14] : memref<3x256x256xbf16, #tpu.memory_space<vmem>>, vector<1x256x256xbf16>
    %21 = vector.shape_cast %20 : vector<1x256x256xbf16> to vector<256x256xbf16>
    %c2 = arith.constant 2 : index
    %c0_15 = arith.constant 0 : index
    %22 = vector.load %arg5[%c2, %c0_15] : memref<5x256xf32, #tpu.memory_space<vmem>>, vector<1x256xf32>
    %cst_16 = arith.constant dense<0.000000e+00> : vector<8x256xf32>
    %23 = tpu.matmul %19, %21, %cst_16 {dimension_numbers = #tpu.dot_dimension_numbers<[1], [0], [0], [1], [0, 0, 1, 1], [], []>} : vector<8x256xbf16>, vector<256x256xbf16>, vector<8x256xf32> -> vector<8x256xf32>
    %24 = vector.broadcast %22 : vector<1x256xf32> to vector<8x256xf32>
    %25 = arith.addf %23, %24 : vector<8x256xf32>
    %cst_17 = arith.constant 0.00999999977 : f32
    %26 = vector.broadcast %cst_17 : f32 to vector<8x256xf32>
    %27 = arith.mulf %26, %25 : vector<8x256xf32>
    %28 = arith.maximumf %25, %27 : vector<8x256xf32>
    %29 = arith.truncf %28 : vector<8x256xf32> to vector<8x256xbf16>
    %c2_18 = arith.constant 2 : index
    %c0_19 = arith.constant 0 : index
    %c0_20 = arith.constant 0 : index
    %30 = vector.load %arg3[%c2_18, %c0_19, %c0_20] : memref<3x256x256xbf16, #tpu.memory_space<vmem>>, vector<1x256x256xbf16>
    %31 = vector.shape_cast %30 : vector<1x256x256xbf16> to vector<256x256xbf16>
    %c3 = arith.constant 3 : index
    %c0_21 = arith.constant 0 : index
    %32 = vector.load %arg5[%c3, %c0_21] : memref<5x256xf32, #tpu.memory_space<vmem>>, vector<1x256xf32>
    %cst_22 = arith.constant dense<0.000000e+00> : vector<8x256xf32>
    %33 = tpu.matmul %29, %31, %cst_22 {dimension_numbers = #tpu.dot_dimension_numbers<[1], [0], [0], [1], [0, 0, 1, 1], [], []>} : vector<8x256xbf16>, vector<256x256xbf16>, vector<8x256xf32> -> vector<8x256xf32>
    %34 = vector.broadcast %32 : vector<1x256xf32> to vector<8x256xf32>
    %35 = arith.addf %33, %34 : vector<8x256xf32>
    %cst_23 = arith.constant 0.00999999977 : f32
    %36 = vector.broadcast %cst_23 : f32 to vector<8x256xf32>
    %37 = arith.mulf %36, %35 : vector<8x256xf32>
    %38 = arith.maximumf %35, %37 : vector<8x256xf32>
    %39 = arith.truncf %38 : vector<8x256xf32> to vector<8x256xbf16>
    %c0_24 = arith.constant 0 : index
    %c0_25 = arith.constant 0 : index
    %40 = vector.load %arg4[%c0_24, %c0_25] : memref<256x128xbf16, #tpu.memory_space<vmem>>, vector<256x128xbf16>
    %cst_26 = arith.constant dense<0.000000e+00> : vector<8x128xf32>
    %41 = tpu.matmul %39, %40, %cst_26 {dimension_numbers = #tpu.dot_dimension_numbers<[1], [0], [0], [1], [0, 0, 1, 1], [], []>} : vector<8x256xbf16>, vector<256x128xbf16>, vector<8x128xf32> -> vector<8x128xf32>
    %c4 = arith.constant 4 : index
    %c0_27 = arith.constant 0 : index
    %42 = vector.load %arg5[%c4, %c0_27] : memref<5x256xf32, #tpu.memory_space<vmem>>, vector<1x128xf32>
    %43 = vector.broadcast %42 : vector<1x128xf32> to vector<8x128xf32>
    %44 = arith.addf %41, %43 : vector<8x128xf32>
    %cst_28 = arith.constant dense<0xFF800000> : vector<8xf32>
    %45 = vector.multi_reduction <maximumf>, %44, %cst_28 [1] : vector<8x128xf32> to vector<8xf32>
    %46 = vector.shape_cast %45 : vector<8xf32> to vector<8x1xf32>
    %47 = vector.broadcast %46 : vector<8x1xf32> to vector<8x128xf32>
    %48 = arith.subf %44, %47 : vector<8x128xf32>
    %49 = math.exp %48 : vector<8x128xf32>
    %cst_29 = arith.constant dense<0.000000e+00> : vector<8xf32>
    %50 = vector.multi_reduction <add>, %49, %cst_29 [1] : vector<8x128xf32> to vector<8xf32>
    %51 = vector.shape_cast %50 : vector<8xf32> to vector<8x1xf32>
    %52 = tpu.reciprocal %51 {approx = true} : vector<8x1xf32> -> vector<8x1xf32>
    %53 = arith.mulf %51, %52 : vector<8x1xf32>
    %cst_30 = arith.constant 2.000000e+00 : f32
    %54 = vector.broadcast %cst_30 : f32 to vector<8x1xf32>
    %55 = arith.subf %54, %53 : vector<8x1xf32>
    %56 = arith.mulf %52, %55 : vector<8x1xf32>
    %57 = vector.broadcast %56 : vector<8x1xf32> to vector<8x128xf32>
    %58 = arith.mulf %49, %57 : vector<8x128xf32>
    %c0_31 = arith.constant 0 : index
    %c0_32 = arith.constant 0 : index
    %59 = vector.load %arg6[%c0_31, %c0_32] : memref<8x128xf32, #tpu.memory_space<vmem>>, vector<8x128xf32>
    tpu.vector_store %arg6[%c0_31, %c0_32], %58 {strides = array<i32>} : memref<8x128xf32, #tpu.memory_space<vmem>>, vector<8x128xf32>,
    return
  }
  func.func @transform_0(%arg0: i32) -> (i32, i32) {
    %c0_i32 = arith.constant 0 : i32
    %c0_i32_0 = arith.constant 0 : i32
    return %arg0, %c0_i32 : i32, i32
  }
  func.func @transform_1(%arg0: i32) -> (i32, i32) {
    %c0_i32 = arith.constant 0 : i32
    %c0_i32_0 = arith.constant 0 : i32
    %c0_i32_1 = arith.constant 0 : i32
    return %c0_i32, %c0_i32_0 : i32, i32
  }
  func.func @transform_2(%arg0: i32) -> (i32, i32, i32) {
    %c0_i32 = arith.constant 0 : i32
    %c0_i32_0 = arith.constant 0 : i32
    %c0_i32_1 = arith.constant 0 : i32
    %c0_i32_2 = arith.constant 0 : i32
    return %c0_i32, %c0_i32_0, %c0_i32_1 : i32, i32, i32
  }
  func.func @transform_3(%arg0: i32) -> (i32, i32) {
    %c0_i32 = arith.constant 0 : i32
    %c0_i32_0 = arith.constant 0 : i32
    %c0_i32_1 = arith.constant 0 : i32
    return %c0_i32, %c0_i32_0 : i32, i32
  }
  func.func @transform_4(%arg0: i32) -> (i32, i32) {
    %c0_i32 = arith.constant 0 : i32
    %c0_i32_0 = arith.constant 0 : i32
    %c0_i32_1 = arith.constant 0 : i32
    return %c0_i32, %c0_i32_0 : i32, i32
  }
  func.func @transform_5(%arg0: i32) -> (i32, i32) {
    %c0_i32 = arith.constant 0 : i32
    %c0_i32_0 = arith.constant 0 : i32
    return %arg0, %c0_i32 : i32, i32
  }
}

</mosaic_0001>

<llo_original>
// kernel: tpu_custom_call.1
$region0: #{tpu_custom_call.1}
  #allocation0 [shape = 'u32[]', space=smem, size = 0x4, offset = 0x4, fixed_abs, tag = 'smem constant byte address 0x4 - core index']
  #allocation1 [shape = 'u32[144,128]{1,0:T(1,128)}', space=vmem, size = 0x12000, scoped, tag = 'internal scratch']
  %s0 = inlined_call_operand.hbm [shape: bf16[8,128], index: 0, kind: input, shape index: {}]
  %s1 = inlined_call_operand.hbm [shape: bf16[128,256], index: 1, kind: input, shape index: {}]
  %s2 = inlined_call_operand.hbm [shape: bf16[3,256,256], index: 2, kind: input, shape index: {}]
  %s3 = inlined_call_operand.hbm [shape: bf16[256,128], index: 3, kind: input, shape index: {}]
  %s4 = inlined_call_operand.hbm [shape: f32[5,256], index: 4, kind: input, shape index: {}]
  %s5 = inlined_call_operand.hbm [shape: f32[8,128], index: 5, kind: output, shape index: {}]
  %s6 = sld [smem:[#allocation0]]
  $region50: #{tpu_custom_call.1} parent=0
    _
  %s8 = ssub.s32 1, %s6
  %s9 = scalar_select 0, %s8, %s6
  $region1: #{tpu_custom_call.1} parent=0
    #allocation2 [shape = 'u8[2048]{0}', space=vmem, size = 0x800, scoped, tag = 'input window, operand 0, single buffered']
    #allocation3 [shape = 's32[1]{0}', space=sflag, size = 0x4, scoped, tag = 'scoped memory for tpu_custom_call.1']
    #allocation4 [shape = 's32[1]{0}', space=sflag, size = 0x4, scoped, tag = 'scoped memory for tpu_custom_call.1']
    #allocation5 [shape = 'u8[65536]{0}', space=vmem, size = 0x10000, scoped, tag = 'input window, operand 1, single buffered']
    #allocation6 [shape = 's32[1]{0}', space=sflag, size = 0x4, scoped, tag = 'scoped memory for tpu_custom_call.1']
    #allocation7 [shape = 'u8[393216]{0}', space=vmem, size = 0x60000, scoped, tag = 'input window, operand 2, single buffered']
    #allocation8 [shape = 'u8[65536]{0}', space=vmem, size = 0x10000, scoped, tag = 'input window, operand 3, single buffered']
    #allocation9 [shape = 's32[1]{0}', space=sflag, size = 0x4, scoped, tag = 'scoped memory for tpu_custom_call.1']
    #allocation10 [shape = 'u8[8192]{0}', space=vmem, size = 0x2000, scoped, tag = 'input window, operand 4, single buffered']
    #allocation11 [shape = 'u8[4096]{0}', space=vmem, size = 0x1000, scoped, tag = 'output window, operand 0, single buffered']
    %10 = vsyncpa [#allocation3], 0
    %11 = vsyncpa [#allocation6], 0
    %12 = vsyncpa [#allocation9], 0
    %13 = vsyncpa [#allocation4], 0
    // Predicated region
    $region2: #{tpu_custom_call.1} parent=1 // pred_check
      _
    $region3: #{tpu_custom_call.1} parent=1 // pred_check_branch
      %15 = sbr.rel (0) target = $region5
    $region4: #{tpu_custom_call.1} parent=1 // pred_region
      %s17 = ssub.s32 64, 64
      %18 = vsyncadd [#allocation3], %s17
      %s20 = sshll.u32 [#allocation2], 4
      %s21 = int_to_ptr.vmem [resolvable:$true] %s20
      %23 = dma.hbm_to_vmem [thread:$0]  %s0, 64, %s21, [#allocation3]
    $region5: #{tpu_custom_call.1} parent=1 // pred_fallthru
      _
    // Predicated region
    $region6: #{tpu_custom_call.1} parent=1 // pred_check
      _
    $region7: #{tpu_custom_call.1} parent=1 // pred_check_branch
      %25 = sbr.rel (0) target = $region9
    $region8: #{tpu_custom_call.1} parent=1 // pred_region
      %s27 = ssub.s32 2048, 2048
      %28 = vsyncadd [#allocation6], %s27
      %s29 = sshll.u32 [#allocation5], 4
      %s30 = int_to_ptr.vmem [resolvable:$true] %s29
      %35 = dma.hbm_to_vmem [thread:$0]  %s1, 2048, %s30, [#allocation6], 128, 128, 8
    $region9: #{tpu_custom_call.1} parent=1 // pred_fallthru
      _
    // Predicated region
    $region10: #{tpu_custom_call.1} parent=1 // pred_check
      _
    $region11: #{tpu_custom_call.1} parent=1 // pred_check_branch
      %37 = sbr.rel (0) target = $region13
    $region12: #{tpu_custom_call.1} parent=1 // pred_region
      %s39 = ssub.s32 12288, 12288
      %40 = vsyncadd [#allocation6], %s39
      %s41 = sshll.u32 [#allocation7], 4
      %s42 = int_to_ptr.vmem [resolvable:$true] %s41
      %47 = dma.hbm_to_vmem [thread:$0]  %s2, 12288, %s42, [#allocation6], 128, 128, 8
    $region13: #{tpu_custom_call.1} parent=1 // pred_fallthru
      _
    // Predicated region
    $region14: #{tpu_custom_call.1} parent=1 // pred_check
      _
    $region15: #{tpu_custom_call.1} parent=1 // pred_check_branch
      %49 = sbr.rel (0) target = $region17
    $region16: #{tpu_custom_call.1} parent=1 // pred_region
      %s51 = ssub.s32 2048, 2048
      %52 = vsyncadd [#allocation9], %s51
      %s53 = sshll.u32 [#allocation8], 4
      %s54 = int_to_ptr.vmem [resolvable:$true] %s53
      %59 = dma.hbm_to_vmem [thread:$0]  %s3, 2048, %s54, [#allocation9], 64, 64, 4
    $region17: #{tpu_custom_call.1} parent=1 // pred_fallthru
      _
    // Predicated region
    $region18: #{tpu_custom_call.1} parent=1 // pred_check
      _
    $region19: #{tpu_custom_call.1} parent=1 // pred_check_branch
      %61 = sbr.rel (0) target = $region21
    $region20: #{tpu_custom_call.1} parent=1 // pred_region
      %s63 = ssub.s32 256, 256
      %64 = vsyncadd [#allocation9], %s63
      %s66 = sshll.u32 [#allocation10], 4
      %s67 = int_to_ptr.vmem [resolvable:$true] %s66
      %69 = dma.hbm_to_vmem [thread:$0]  %s4, 256, %s67, [#allocation9]
    $region21: #{tpu_custom_call.1} parent=1 // pred_fallthru
      _
    // Predicated region
    $region22: #{tpu_custom_call.1} parent=1 // pred_check
      _
    $region23: #{tpu_custom_call.1} parent=1 // pred_check_branch
      %71 = sbr.rel (0) target = $region25
    $region24: #{tpu_custom_call.1} parent=1 // pred_region
      %72 = dma.done [#allocation3], 64
    $region25: #{tpu_custom_call.1} parent=1 // pred_fallthru
      _
    // Predicated region
    $region26: #{tpu_custom_call.1} parent=1 // pred_check
      _
    $region27: #{tpu_custom_call.1} parent=1 // pred_check_branch
      %74 = sbr.rel (0) target = $region29
    $region28: #{tpu_custom_call.1} parent=1 // pred_region
      %75 = dma.done [#allocation6], 2048
    $region29: #{tpu_custom_call.1} parent=1 // pred_fallthru
      _
    // Predicated region
    $region30: #{tpu_custom_call.1} parent=1 // pred_check
      _
    $region31: #{tpu_custom_call.1} parent=1 // pred_check_branch
      %77 = sbr.rel (0) target = $region33
    $region32: #{tpu_custom_call.1} parent=1 // pred_region
      %78 = dma.done [#allocation6], 12288
    $region33: #{tpu_custom_call.1} parent=1 // pred_fallthru
      _
    // Predicated region
    $region34: #{tpu_custom_call.1} parent=1 // pred_check
      _
    $region35: #{tpu_custom_call.1} parent=1 // pred_check_branch
      %80 = sbr.rel (0) target = $region37
    $region36: #{tpu_custom_call.1} parent=1 // pred_region
      %81 = dma.done [#allocation9], 2048
    $region37: #{tpu_custom_call.1} parent=1 // pred_fallthru
      _
    // Predicated region
    $region38: #{tpu_custom_call.1} parent=1 // pred_check
      _
    $region39: #{tpu_custom_call.1} parent=1 // pred_check_branch
      %83 = sbr.rel (0) target = $region41
    $region40: #{tpu_custom_call.1} parent=1 // pred_region
      %84 = dma.done [#allocation9], 256
    $region41: #{tpu_custom_call.1} parent=1 // pred_fallthru
      _
    %v86 = vld [vmem:[#allocation2] sm:$0xf]
    %v87 = vld [vmem:[#allocation5] sm:$0xff]
    %v88 = vld [vmem:[#allocation5 + $0x8] sm:$0xff]
    %v89 = vld [vmem:[#allocation5 + $0x10] sm:$0xff]
    %v90 = vld [vmem:[#allocation5 + $0x18] sm:$0xff]
    %v91 = vld [vmem:[#allocation5 + $0x20] sm:$0xff]
    %v92 = vld [vmem:[#allocation5 + $0x28] sm:$0xff]
    %v93 = vld [vmem:[#allocation5 + $0x30] sm:$0xff]
    %v94 = vld [vmem:[#allocation5 + $0x38] sm:$0xff]
    %v95 = vld [vmem:[#allocation5 + $0x40] sm:$0xff]
    %v96 = vld [vmem:[#allocation5 + $0x48] sm:$0xff]
    %v97 = vld [vmem:[#allocation5 + $0x50] sm:$0xff]
    %v98 = vld [vmem:[#allocation5 + $0x58] sm:$0xff]
    %v99 = vld [vmem:[#allocation5 + $0x60] sm:$0xff]
    %v100 = vld [vmem:[#allocation5 + $0x68] sm:$0xff]
    %v101 = vld [vmem:[#allocation5 + $0x70] sm:$0xff]
    %v102 = vld [vmem:[#allocation5 + $0x78] sm:$0xff]
    %v103 = vld [vmem:[#allocation10] ss:$8 sm:$0x3]
    %v105 = vlaneseq
    %v106 = vshrl.u32 %v105, 7
    %v107 = vsub.s32 0, %v106
    %v108 = vrot.slane %v103, %v107
    %v109 = vlaneseq
    %v110 = vshrl.u32 %v109, 7
    %v111 = vsub.s32 1, %v110
    %v112 = vrot.slane %v103, %v111
    %v131 = vunpack.c.l.b16 %v87
    %v132 = vunpack.c.h.b16 %v87
    %v133 = vunpack.c.l.b16 %v88
    %v134 = vunpack.c.h.b16 %v88
    %v135 = vunpack.c.l.b16 %v89
    %v136 = vunpack.c.h.b16 %v89
    %v137 = vunpack.c.l.b16 %v90
    %v138 = vunpack.c.h.b16 %v90
    %v139 = vunpack.c.l.b16 %v91
    %v140 = vunpack.c.h.b16 %v91
    %v141 = vunpack.c.l.b16 %v92
    %v142 = vunpack.c.h.b16 %v92
    %v143 = vunpack.c.l.b16 %v93
    %v144 = vunpack.c.h.b16 %v93
    %v145 = vunpack.c.l.b16 %v94
    %v146 = vunpack.c.h.b16 %v94
    %v147 = vunpack.c.l.b16 %v95
    %v148 = vunpack.c.h.b16 %v95
    %v149 = vunpack.c.l.b16 %v96
    %v150 = vunpack.c.h.b16 %v96
    %v151 = vunpack.c.l.b16 %v97
    %v152 = vunpack.c.h.b16 %v97
    %v153 = vunpack.c.l.b16 %v98
    %v154 = vunpack.c.h.b16 %v98
    %v155 = vunpack.c.l.b16 %v99
    %v156 = vunpack.c.h.b16 %v99
    %v157 = vunpack.c.l.b16 %v100
    %v158 = vunpack.c.h.b16 %v100
    %v159 = vunpack.c.l.b16 %v101
    %v160 = vunpack.c.h.b16 %v101
    %v161 = vunpack.c.l.b16 %v102
    %v162 = vunpack.c.h.b16 %v102
    %v163 = vpack.c.b16 %v133, %v131
    %v164 = vpack.c.b16 %v134, %v132
    %v165 = vpack.c.b16 %v137, %v135
    %v166 = vpack.c.b16 %v138, %v136
    %v167 = vpack.c.b16 %v141, %v139
    %v168 = vpack.c.b16 %v142, %v140
    %v169 = vpack.c.b16 %v145, %v143
    %v170 = vpack.c.b16 %v146, %v144
    %v171 = vpack.c.b16 %v149, %v147
    %v172 = vpack.c.b16 %v150, %v148
    %v173 = vpack.c.b16 %v153, %v151
    %v174 = vpack.c.b16 %v154, %v152
    %v175 = vpack.c.b16 %v157, %v155
    %v176 = vpack.c.b16 %v158, %v156
    %v177 = vpack.c.b16 %v161, %v159
    %v178 = vpack.c.b16 %v162, %v160
    %195 = vmatprep.subr.bf16.mxu0 %v178
    %196 = vmatpush1.bf16.msra.mxu0 %v177
    %197 = vmatprep.subr.bf16.mxu0 %v176
    %198 = vmatpush1.bf16.msra.mxu0 %v175
    %199 = vmatprep.subr.bf16.mxu0 %v174
    %200 = vmatpush1.bf16.msra.mxu0 %v173
    %201 = vmatprep.subr.bf16.mxu0 %v172
    %202 = vmatpush1.bf16.msra.mxu0 %v171
    %203 = vmatprep.subr.bf16.mxu0 %v170
    %204 = vmatpush1.bf16.msra.mxu0 %v169
    %205 = vmatprep.subr.bf16.mxu0 %v168
    %206 = vmatpush1.bf16.msra.mxu0 %v167
    %207 = vmatprep.subr.bf16.mxu0 %v166
    %208 = vmatpush1.bf16.msra.mxu0 %v165
    %209 = vmatprep.subr.bf16.mxu0 %v164
    %210 = vmatpush1.bf16.msra.mxu0 %v163
    %211 = vmatprep.subr.bf16.mxu0 0
    %212 = vmatpush2.bf16.msra.mxu0 0
    %213 = vmatprep.subr.bf16.mxu0 0
    %214 = vmatpush2.bf16.msra.mxu0 0
    %215 = vmatprep.subr.bf16.mxu0 0
    %216 = vmatpush2.bf16.msra.mxu0 0
    %217 = vmatprep.subr.bf16.mxu0 0
    %218 = vmatpush2.bf16.msra.mxu0 0
    %219 = vmatprep.subr.bf16.mxu0 0
    %220 = vmatpush2.bf16.msra.mxu0 0
    %221 = vmatprep.subr.bf16.mxu0 0
    %222 = vmatpush2.bf16.msra.mxu0 0
    %223 = vmatprep.subr.bf16.mxu0 0
    %224 = vmatpush2.bf16.msra.mxu0 0
    %225 = vmatprep.subr.bf16.mxu0 0
    %226 = vmatpush2.bf16.msra.mxu0 0
    %227 = vmatprep.mubr.bf16.mxu0 0
    %228 = vmatmul.mubr.bf16.gmra.mxu0 %v86
    %v229 = vpop.f32.mrf.mxu0
    %v230 = vadd.f32 %v108, %v229
    %v231 = vpop.f32.mrf.mxu0
    %v232 = vadd.f32 %v112, %v231
    %v233 = vpop.f32.mrf.mxu0
    %v234 = vpop.f32.mrf.mxu0
    %235 = vdwg.mxu0
    %v236 = vmul.f32 %v230, 0.01
    %v237 = vmul.f32 %v232, 0.01
    %v238 = vmax.f32 %v230, %v236
    %v239 = vmax.f32 %v232, %v237
    %v240 = vpack.c.bf16 %v238, %v238
    %v241 = vpack.c.bf16 %v239, %v239
    %v242 = vld [vmem:[#allocation7] sm:$0xff]
    %v243 = vld [vmem:[#allocation7 + $0x8] sm:$0xff]
    %v244 = vld [vmem:[#allocation7 + $0x10] sm:$0xff]
    %v245 = vld [vmem:[#allocation7 + $0x18] sm:$0xff]
    %v246 = vld [vmem:[#allocation7 + $0x20] sm:$0xff]
    %v247 = vld [vmem:[#allocation7 + $0x28] sm:$0xff]
    %v248 = vld [vmem:[#allocation7 + $0x30] sm:$0xff]
    %v249 = vld [vmem:[#allocation7 + $0x38] sm:$0xff]
    %v250 = vld [vmem:[#allocation7 + $0x40] sm:$0xff]
    %v251 = vld [vmem:[#allocation7 + $0x48] sm:$0xff]
    %v252 = vld [vmem:[#allocation7 + $0x50] sm:$0xff]
    %v253 = vld [vmem:[#allocation7 + $0x58] sm:$0xff]
    %v254 = vld [vmem:[#allocation7 + $0x60] sm:$0xff]
    %v255 = vld [vmem:[#allocation7 + $0x68] sm:$0xff]
    %v256 = vld [vmem:[#allocation7 + $0x70] sm:$0xff]
    %v257 = vld [vmem:[#allocation7 + $0x78] sm:$0xff]
    %v258 = vld [vmem:[#allocation7 + $0x80] sm:$0xff]
    %v259 = vld [vmem:[#allocation7 + $0x88] sm:$0xff]
    %v260 = vld [vmem:[#allocation7 + $0x90] sm:$0xff]
    %v261 = vld [vmem:[#allocation7 + $0x98] sm:$0xff]
    %v262 = vld [vmem:[#allocation7 + $0xa0] sm:$0xff]
    %v263 = vld [vmem:[#allocation7 + $0xa8] sm:$0xff]
    %v264 = vld [vmem:[#allocation7 + $0xb0] sm:$0xff]
    %v265 = vld [vmem:[#allocation7 + $0xb8] sm:$0xff]
    %v266 = vld [vmem:[#allocation7 + $0xc0] sm:$0xff]
    %v267 = vld [vmem:[#allocation7 + $0xc8] sm:$0xff]
    %v268 = vld [vmem:[#allocation7 + $0xd0] sm:$0xff]
    %v269 = vld [vmem:[#allocation7 + $0xd8] sm:$0xff]
    %v270 = vld [vmem:[#allocation7 + $0xe0] sm:$0xff]
    %v271 = vld [vmem:[#allocation7 + $0xe8] sm:$0xff]
    %v272 = vld [vmem:[#allocation7 + $0xf0] sm:$0xff]
    %v273 = vld [vmem:[#allocation7 + $0xf8] sm:$0xff]
    %s274 = scalar_lea.vmem [#allocation10], 1
    %v275 = vld [vmem:[%s274] ss:$8 sm:$0x3]
    %v277 = vlaneseq
    %v278 = vshrl.u32 %v277, 7
    %v279 = vsub.s32 0, %v278
    %v280 = vrot.slane %v275, %v279
    %v281 = vlaneseq
    %v282 = vshrl.u32 %v281, 7
    %v283 = vsub.s32 1, %v282
    %v284 = vrot.slane %v275, %v283
    %v319 = vunpack.c.l.b16 %v242
    %v320 = vunpack.c.h.b16 %v242
    %v321 = vunpack.c.l.b16 %v243
    %v322 = vunpack.c.h.b16 %v243
    %v323 = vunpack.c.l.b16 %v244
    %v324 = vunpack.c.h.b16 %v244
    %v325 = vunpack.c.l.b16 %v245
    %v326 = vunpack.c.h.b16 %v245
    %v327 = vunpack.c.l.b16 %v246
    %v328 = vunpack.c.h.b16 %v246
    %v329 = vunpack.c.l.b16 %v247
    %v330 = vunpack.c.h.b16 %v247
    %v331 = vunpack.c.l.b16 %v248
    %v332 = vunpack.c.h.b16 %v248
    %v333 = vunpack.c.l.b16 %v249
    %v334 = vunpack.c.h.b16 %v249
    %v335 = vunpack.c.l.b16 %v250
    %v336 = vunpack.c.h.b16 %v250
    %v337 = vunpack.c.l.b16 %v251
    %v338 = vunpack.c.h.b16 %v251
    %v339 = vunpack.c.l.b16 %v252
    %v340 = vunpack.c.h.b16 %v252
    %v341 = vunpack.c.l.b16 %v253
    %v342 = vunpack.c.h.b16 %v253
    %v343 = vunpack.c.l.b16 %v254
    %v344 = vunpack.c.h.b16 %v254
    %v345 = vunpack.c.l.b16 %v255
    %v346 = vunpack.c.h.b16 %v255
    %v347 = vunpack.c.l.b16 %v256
    %v348 = vunpack.c.h.b16 %v256
    %v349 = vunpack.c.l.b16 %v257
    %v350 = vunpack.c.h.b16 %v257
    %v351 = vunpack.c.l.b16 %v258
    %v352 = vunpack.c.h.b16 %v258
    %v353 = vunpack.c.l.b16 %v259
    %v354 = vunpack.c.h.b16 %v259
    %v355 = vunpack.c.l.b16 %v260
    %v356 = vunpack.c.h.b16 %v260
    %v357 = vunpack.c.l.b16 %v261
    %v358 = vunpack.c.h.b16 %v261
    %v359 = vunpack.c.l.b16 %v262
    %v360 = vunpack.c.h.b16 %v262
    %v361 = vunpack.c.l.b16 %v263
    %v362 = vunpack.c.h.b16 %v263
    %v363 = vunpack.c.l.b16 %v264
    %v364 = vunpack.c.h.b16 %v264
    %v365 = vunpack.c.l.b16 %v265
    %v366 = vunpack.c.h.b16 %v265
    %v367 = vunpack.c.l.b16 %v266
    %v368 = vunpack.c.h.b16 %v266
    %v369 = vunpack.c.l.b16 %v267
    %v370 = vunpack.c.h.b16 %v267
    %v371 = vunpack.c.l.b16 %v268
    %v372 = vunpack.c.h.b16 %v268
    %v373 = vunpack.c.l.b16 %v269
    %v374 = vunpack.c.h.b16 %v269
    %v375 = vunpack.c.l.b16 %v270
    %v376 = vunpack.c.h.b16 %v270
    %v377 = vunpack.c.l.b16 %v271
    %v378 = vunpack.c.h.b16 %v271
    %v379 = vunpack.c.l.b16 %v272
    %v380 = vunpack.c.h.b16 %v272
    %v381 = vunpack.c.l.b16 %v273
    %v382 = vunpack.c.h.b16 %v273
    %v383 = vpack.c.b16 %v321, %v319
    %v384 = vpack.c.b16 %v322, %v320
    %v385 = vpack.c.b16 %v325, %v323
    %v386 = vpack.c.b16 %v326, %v324
    %v387 = vpack.c.b16 %v329, %v327
    %v388 = vpack.c.b16 %v330, %v328
    %v389 = vpack.c.b16 %v333, %v331
    %v390 = vpack.c.b16 %v334, %v332
    %v391 = vpack.c.b16 %v337, %v335
    %v392 = vpack.c.b16 %v338, %v336
    %v393 = vpack.c.b16 %v341, %v339
    %v394 = vpack.c.b16 %v342, %v340
    %v395 = vpack.c.b16 %v345, %v343
    %v396 = vpack.c.b16 %v346, %v344
    %v397 = vpack.c.b16 %v349, %v347
    %v398 = vpack.c.b16 %v350, %v348
    %v399 = vpack.c.b16 %v353, %v351
    %v400 = vpack.c.b16 %v354, %v352
    %v401 = vpack.c.b16 %v357, %v355
    %v402 = vpack.c.b16 %v358, %v356
    %v403 = vpack.c.b16 %v361, %v359
    %v404 = vpack.c.b16 %v362, %v360
    %v405 = vpack.c.b16 %v365, %v363
    %v406 = vpack.c.b16 %v366, %v364
    %v407 = vpack.c.b16 %v369, %v367
    %v408 = vpack.c.b16 %v370, %v368
    %v409 = vpack.c.b16 %v373, %v371
    %v410 = vpack.c.b16 %v374, %v372
    %v411 = vpack.c.b16 %v377, %v375
    %v412 = vpack.c.b16 %v378, %v376
    %v413 = vpack.c.b16 %v381, %v379
    %v414 = vpack.c.b16 %v382, %v380
    %447 = vmatprep.subr.bf16.mxu0 %v398
    %448 = vmatpush1.bf16.msra.mxu0 %v397
    %449 = vmatprep.subr.bf16.mxu0 %v396
    %450 = vmatpush1.bf16.msra.mxu0 %v395
    %451 = vmatprep.subr.bf16.mxu0 %v394
    %452 = vmatpush1.bf16.msra.mxu0 %v393
    %453 = vmatprep.subr.bf16.mxu0 %v392
    %454 = vmatpush1.bf16.msra.mxu0 %v391
    %455 = vmatprep.subr.bf16.mxu0 %v390
    %456 = vmatpush1.bf16.msra.mxu0 %v389
    %457 = vmatprep.subr.bf16.mxu0 %v388
    %458 = vmatpush1.bf16.msra.mxu0 %v387
    %459 = vmatprep.subr.bf16.mxu0 %v386
    %460 = vmatpush1.bf16.msra.mxu0 %v385
    %461 = vmatprep.subr.bf16.mxu0 %v384
    %462 = vmatpush1.bf16.msra.mxu0 %v383
    %463 = vmatprep.subr.bf16.mxu0 %v414
    %464 = vmatpush2.bf16.msra.mxu0 %v413
    %465 = vmatprep.subr.bf16.mxu0 %v412
    %466 = vmatpush2.bf16.msra.mxu0 %v411
    %467 = vmatprep.subr.bf16.mxu0 %v410
    %468 = vmatpush2.bf16.msra.mxu0 %v409
    %469 = vmatprep.subr.bf16.mxu0 %v408
    %470 = vmatpush2.bf16.msra.mxu0 %v407
    %471 = vmatprep.subr.bf16.mxu0 %v406
    %472 = vmatpush2.bf16.msra.mxu0 %v405
    %473 = vmatprep.subr.bf16.mxu0 %v404
    %474 = vmatpush2.bf16.msra.mxu0 %v403
    %475 = vmatprep.subr.bf16.mxu0 %v402
    %476 = vmatpush2.bf16.msra.mxu0 %v401
    %477 = vmatprep.subr.bf16.mxu0 %v400
    %478 = vmatpush2.bf16.msra.mxu0 %v399
    %479 = vmatprep.mubr.bf16.mxu0 %v241
    %480 = vmatmul.mubr.bf16.gmra.mxu0 %v240
    %v481 = vpop.f32.mrf.mxu0
    %v482 = vadd.f32 %v280, %v481
    %v483 = vpop.f32.mrf.mxu0
    %v484 = vadd.f32 %v284, %v483
    %v485 = vpop.f32.mrf.mxu0
    %v486 = vpop.f32.mrf.mxu0
    %487 = vdwg.mxu0
    %v488 = vmul.f32 %v482, 0.01
    %v489 = vmul.f32 %v484, 0.01
    %v490 = vmax.f32 %v482, %v488
    %v491 = vmax.f32 %v484, %v489
    %v492 = vpack.c.bf16 %v490, %v490
    %v493 = vpack.c.bf16 %v491, %v491
    %s494 = scalar_lea.vmem [#allocation7], 256
    %v495 = vld [vmem:[%s494] sm:$0xff]
    %v496 = vld [vmem:[%s494 + $0x8] sm:$0xff]
    %v497 = vld [vmem:[%s494 + $0x10] sm:$0xff]
    %v498 = vld [vmem:[%s494 + $0x18] sm:$0xff]
    %v499 = vld [vmem:[%s494 + $0x20] sm:$0xff]
    %v500 = vld [vmem:[%s494 + $0x28] sm:$0xff]
    %v501 = vld [vmem:[%s494 + $0x30] sm:$0xff]
    %v502 = vld [vmem:[%s494 + $0x38] sm:$0xff]
    %v503 = vld [vmem:[%s494 + $0x40] sm:$0xff]
    %v504 = vld [vmem:[%s494 + $0x48] sm:$0xff]
    %v505 = vld [vmem:[%s494 + $0x50] sm:$0xff]
    %v506 = vld [vmem:[%s494 + $0x58] sm:$0xff]
    %v507 = vld [vmem:[%s494 + $0x60] sm:$0xff]
    %v508 = vld [vmem:[%s494 + $0x68] sm:$0xff]
    %v509 = vld [vmem:[%s494 + $0x70] sm:$0xff]
    %v510 = vld [vmem:[%s494 + $0x78] sm:$0xff]
    %v511 = vld [vmem:[%s494 + $0x80] sm:$0xff]
    %v512 = vld [vmem:[%s494 + $0x88] sm:$0xff]
    %v513 = vld [vmem:[%s494 + $0x90] sm:$0xff]
    %v514 = vld [vmem:[%s494 + $0x98] sm:$0xff]
    %v515 = vld [vmem:[%s494 + $0xa0] sm:$0xff]
    %v516 = vld [vmem:[%s494 + $0xa8] sm:$0xff]
    %v517 = vld [vmem:[%s494 + $0xb0] sm:$0xff]
    %v518 = vld [vmem:[%s494 + $0xb8] sm:$0xff]
    %v519 = vld [vmem:[%s494 + $0xc0] sm:$0xff]
    %v520 = vld [vmem:[%s494 + $0xc8] sm:$0xff]
    %v521 = vld [vmem:[%s494 + $0xd0] sm:$0xff]
    %v522 = vld [vmem:[%s494 + $0xd8] sm:$0xff]
    %v523 = vld [vmem:[%s494 + $0xe0] sm:$0xff]
    %v524 = vld [vmem:[%s494 + $0xe8] sm:$0xff]
    %v525 = vld [vmem:[%s494 + $0xf0] sm:$0xff]
    %v526 = vld [vmem:[%s494 + $0xf8] sm:$0xff]
    %s527 = scalar_lea.vmem [#allocation10], 2
    %v528 = vld [vmem:[%s527] ss:$8 sm:$0x3]
    %v530 = vlaneseq
    %v531 = vshrl.u32 %v530, 7
    %v532 = vsub.s32 0, %v531
    %v533 = vrot.slane %v528, %v532
    %v534 = vlaneseq
    %v535 = vshrl.u32 %v534, 7
    %v536 = vsub.s32 1, %v535
    %v537 = vrot.slane %v528, %v536
    %v572 = vunpack.c.l.b16 %v495
    %v573 = vunpack.c.h.b16 %v495
    %v574 = vunpack.c.l.b16 %v496
    %v575 = vunpack.c.h.b16 %v496
    %v576 = vunpack.c.l.b16 %v497
    %v577 = vunpack.c.h.b16 %v497
    %v578 = vunpack.c.l.b16 %v498
    %v579 = vunpack.c.h.b16 %v498
    %v580 = vunpack.c.l.b16 %v499
    %v581 = vunpack.c.h.b16 %v499
    %v582 = vunpack.c.l.b16 %v500
    %v583 = vunpack.c.h.b16 %v500
    %v584 = vunpack.c.l.b16 %v501
    %v585 = vunpack.c.h.b16 %v501
    %v586 = vunpack.c.l.b16 %v502
    %v587 = vunpack.c.h.b16 %v502
    %v588 = vunpack.c.l.b16 %v503
    %v589 = vunpack.c.h.b16 %v503
    %v590 = vunpack.c.l.b16 %v504
    %v591 = vunpack.c.h.b16 %v504
    %v592 = vunpack.c.l.b16 %v505
    %v593 = vunpack.c.h.b16 %v505
    %v594 = vunpack.c.l.b16 %v506
    %v595 = vunpack.c.h.b16 %v506
    %v596 = vunpack.c.l.b16 %v507
    %v597 = vunpack.c.h.b16 %v507
    %v598 = vunpack.c.l.b16 %v508
    %v599 = vunpack.c.h.b16 %v508
    %v600 = vunpack.c.l.b16 %v509
    %v601 = vunpack.c.h.b16 %v509
    %v602 = vunpack.c.l.b16 %v510
    %v603 = vunpack.c.h.b16 %v510
    %v604 = vunpack.c.l.b16 %v511
    %v605 = vunpack.c.h.b16 %v511
    %v606 = vunpack.c.l.b16 %v512
    %v607 = vunpack.c.h.b16 %v512
    %v608 = vunpack.c.l.b16 %v513
    %v609 = vunpack.c.h.b16 %v513
    %v610 = vunpack.c.l.b16 %v514
    %v611 = vunpack.c.h.b16 %v514
    %v612 = vunpack.c.l.b16 %v515
    %v613 = vunpack.c.h.b16 %v515
    %v614 = vunpack.c.l.b16 %v516
    %v615 = vunpack.c.h.b16 %v516
    %v616 = vunpack.c.l.b16 %v517
    %v617 = vunpack.c.h.b16 %v517
    %v618 = vunpack.c.l.b16 %v518
    %v619 = vunpack.c.h.b16 %v518
    %v620 = vunpack.c.l.b16 %v519
    %v621 = vunpack.c.h.b16 %v519
    %v622 = vunpack.c.l.b16 %v520
    %v623 = vunpack.c.h.b16 %v520
    %v624 = vunpack.c.l.b16 %v521
    %v625 = vunpack.c.h.b16 %v521
    %v626 = vunpack.c.l.b16 %v522
    %v627 = vunpack.c.h.b16 %v522
    %v628 = vunpack.c.l.b16 %v523
    %v629 = vunpack.c.h.b16 %v523
    %v630 = vunpack.c.l.b16 %v524
    %v631 = vunpack.c.h.b16 %v524
    %v632 = vunpack.c.l.b16 %v525
    %v633 = vunpack.c.h.b16 %v525
    %v634 = vunpack.c.l.b16 %v526
    %v635 = vunpack.c.h.b16 %v526
    %v636 = vpack.c.b16 %v574, %v572
    %v637 = vpack.c.b16 %v575, %v573
    %v638 = vpack.c.b16 %v578, %v576
    %v639 = vpack.c.b16 %v579, %v577
    %v640 = vpack.c.b16 %v582, %v580
    %v641 = vpack.c.b16 %v583, %v581
    %v642 = vpack.c.b16 %v586, %v584
    %v643 = vpack.c.b16 %v587, %v585
    %v644 = vpack.c.b16 %v590, %v588
    %v645 = vpack.c.b16 %v591, %v589
    %v646 = vpack.c.b16 %v594, %v592
    %v647 = vpack.c.b16 %v595, %v593
    %v648 = vpack.c.b16 %v598, %v596
    %v649 = vpack.c.b16 %v599, %v597
    %v650 = vpack.c.b16 %v602, %v600
    %v651 = vpack.c.b16 %v603, %v601
    %v652 = vpack.c.b16 %v606, %v604
    %v653 = vpack.c.b16 %v607, %v605
    %v654 = vpack.c.b16 %v610, %v608
    %v655 = vpack.c.b16 %v611, %v609
    %v656 = vpack.c.b16 %v614, %v612
    %v657 = vpack.c.b16 %v615, %v613
    %v658 = vpack.c.b16 %v618, %v616
    %v659 = vpack.c.b16 %v619, %v617
    %v660 = vpack.c.b16 %v622, %v620
    %v661 = vpack.c.b16 %v623, %v621
    %v662 = vpack.c.b16 %v626, %v624
    %v663 = vpack.c.b16 %v627, %v625
    %v664 = vpack.c.b16 %v630, %v628
    %v665 = vpack.c.b16 %v631, %v629
    %v666 = vpack.c.b16 %v634, %v632
    %v667 = vpack.c.b16 %v635, %v633
    %700 = vmatprep.subr.bf16.mxu0 %v651
    %701 = vmatpush1.bf16.msra.mxu0 %v650
    %702 = vmatprep.subr.bf16.mxu0 %v649
    %703 = vmatpush1.bf16.msra.mxu0 %v648
    %704 = vmatprep.subr.bf16.mxu0 %v647
    %705 = vmatpush1.bf16.msra.mxu0 %v646
    %706 = vmatprep.subr.bf16.mxu0 %v645
    %707 = vmatpush1.bf16.msra.mxu0 %v644
    %708 = vmatprep.subr.bf16.mxu0 %v643
    %709 = vmatpush1.bf16.msra.mxu0 %v642
    %710 = vmatprep.subr.bf16.mxu0 %v641
    %711 = vmatpush1.bf16.msra.mxu0 %v640
    %712 = vmatprep.subr.bf16.mxu0 %v639
    %713 = vmatpush1.bf16.msra.mxu0 %v638
    %714 = vmatprep.subr.bf16.mxu0 %v637
    %715 = vmatpush1.bf16.msra.mxu0 %v636
    %716 = vmatprep.subr.bf16.mxu0 %v667
    %717 = vmatpush2.bf16.msra.mxu0 %v666
    %718 = vmatprep.subr.bf16.mxu0 %v665
    %719 = vmatpush2.bf16.msra.mxu0 %v664
    %720 = vmatprep.subr.bf16.mxu0 %v663
    %721 = vmatpush2.bf16.msra.mxu0 %v662
    %722 = vmatprep.subr.bf16.mxu0 %v661
    %723 = vmatpush2.bf16.msra.mxu0 %v660
    %724 = vmatprep.subr.bf16.mxu0 %v659
    %725 = vmatpush2.bf16.msra.mxu0 %v658
    %726 = vmatprep.subr.bf16.mxu0 %v657
    %727 = vmatpush2.bf16.msra.mxu0 %v656
    %728 = vmatprep.subr.bf16.mxu0 %v655
    %729 = vmatpush2.bf16.msra.mxu0 %v654
    %730 = vmatprep.subr.bf16.mxu0 %v653
    %731 = vmatpush2.bf16.msra.mxu0 %v652
    %732 = vmatprep.mubr.bf16.mxu0 %v493
    %733 = vmatmul.mubr.bf16.gmra.mxu0 %v492
    %v734 = vpop.f32.mrf.mxu0
    %v735 = vadd.f32 %v533, %v734
    %v736 = vpop.f32.mrf.mxu0
    %v737 = vadd.f32 %v537, %v736
    %v738 = vpop.f32.mrf.mxu0
    %v739 = vpop.f32.mrf.mxu0
    %740 = vdwg.mxu0
    %v741 = vmul.f32 %v735, 0.01
    %v742 = vmul.f32 %v737, 0.01
    %v743 = vmax.f32 %v735, %v741
    %v744 = vmax.f32 %v737, %v742
    %v745 = vpack.c.bf16 %v743, %v743
    %v746 = vpack.c.bf16 %v744, %v744
    %s747 = scalar_lea.vmem [#allocation7], 512
    %v748 = vld [vmem:[%s747] sm:$0xff]
    %v749 = vld [vmem:[%s747 + $0x8] sm:$0xff]
    %v750 = vld [vmem:[%s747 + $0x10] sm:$0xff]
    %v751 = vld [vmem:[%s747 + $0x18] sm:$0xff]
    %v752 = vld [vmem:[%s747 + $0x20] sm:$0xff]
    %v753 = vld [vmem:[%s747 + $0x28] sm:$0xff]
    %v754 = vld [vmem:[%s747 + $0x30] sm:$0xff]
    %v755 = vld [vmem:[%s747 + $0x38] sm:$0xff]
    %v756 = vld [vmem:[%s747 + $0x40] sm:$0xff]
    %v757 = vld [vmem:[%s747 + $0x48] sm:$0xff]
    %v758 = vld [vmem:[%s747 + $0x50] sm:$0xff]
    %v759 = vld [vmem:[%s747 + $0x58] sm:$0xff]
    %v760 = vld [vmem:[%s747 + $0x60] sm:$0xff]
    %v761 = vld [vmem:[%s747 + $0x68] sm:$0xff]
    %v762 = vld [vmem:[%s747 + $0x70] sm:$0xff]
    %v763 = vld [vmem:[%s747 + $0x78] sm:$0xff]
    %v764 = vld [vmem:[%s747 + $0x80] sm:$0xff]
    %v765 = vld [vmem:[%s747 + $0x88] sm:$0xff]
    %v766 = vld [vmem:[%s747 + $0x90] sm:$0xff]
    %v767 = vld [vmem:[%s747 + $0x98] sm:$0xff]
    %v768 = vld [vmem:[%s747 + $0xa0] sm:$0xff]
    %v769 = vld [vmem:[%s747 + $0xa8] sm:$0xff]
    %v770 = vld [vmem:[%s747 + $0xb0] sm:$0xff]
    %v771 = vld [vmem:[%s747 + $0xb8] sm:$0xff]
    %v772 = vld [vmem:[%s747 + $0xc0] sm:$0xff]
    %v773 = vld [vmem:[%s747 + $0xc8] sm:$0xff]
    %v774 = vld [vmem:[%s747 + $0xd0] sm:$0xff]
    %v775 = vld [vmem:[%s747 + $0xd8] sm:$0xff]
    %v776 = vld [vmem:[%s747 + $0xe0] sm:$0xff]
    %v777 = vld [vmem:[%s747 + $0xe8] sm:$0xff]
    %v778 = vld [vmem:[%s747 + $0xf0] sm:$0xff]
    %v779 = vld [vmem:[%s747 + $0xf8] sm:$0xff]
    %s780 = scalar_lea.vmem [#allocation10], 3
    %v781 = vld [vmem:[%s780] ss:$8 sm:$0x3]
    %v783 = vlaneseq
    %v784 = vshrl.u32 %v783, 7
    %v785 = vsub.s32 0, %v784
    %v786 = vrot.slane %v781, %v785
    %v787 = vlaneseq
    %v788 = vshrl.u32 %v787, 7
    %v789 = vsub.s32 1, %v788
    %v790 = vrot.slane %v781, %v789
    %v825 = vunpack.c.l.b16 %v748
    %v826 = vunpack.c.h.b16 %v748
    %v827 = vunpack.c.l.b16 %v749
    %v828 = vunpack.c.h.b16 %v749
    %v829 = vunpack.c.l.b16 %v750
    %v830 = vunpack.c.h.b16 %v750
    %v831 = vunpack.c.l.b16 %v751
    %v832 = vunpack.c.h.b16 %v751
    %v833 = vunpack.c.l.b16 %v752
    %v834 = vunpack.c.h.b16 %v752
    %v835 = vunpack.c.l.b16 %v753
    %v836 = vunpack.c.h.b16 %v753
    %v837 = vunpack.c.l.b16 %v754
    %v838 = vunpack.c.h.b16 %v754
    %v839 = vunpack.c.l.b16 %v755
    %v840 = vunpack.c.h.b16 %v755
    %v841 = vunpack.c.l.b16 %v756
    %v842 = vunpack.c.h.b16 %v756
    %v843 = vunpack.c.l.b16 %v757
    %v844 = vunpack.c.h.b16 %v757
    %v845 = vunpack.c.l.b16 %v758
    %v846 = vunpack.c.h.b16 %v758
    %v847 = vunpack.c.l.b16 %v759
    %v848 = vunpack.c.h.b16 %v759
    %v849 = vunpack.c.l.b16 %v760
    %v850 = vunpack.c.h.b16 %v760
    %v851 = vunpack.c.l.b16 %v761
    %v852 = vunpack.c.h.b16 %v761
    %v853 = vunpack.c.l.b16 %v762
    %v854 = vunpack.c.h.b16 %v762
    %v855 = vunpack.c.l.b16 %v763
    %v856 = vunpack.c.h.b16 %v763
    %v857 = vunpack.c.l.b16 %v764
    %v858 = vunpack.c.h.b16 %v764
    %v859 = vunpack.c.l.b16 %v765
    %v860 = vunpack.c.h.b16 %v765
    %v861 = vunpack.c.l.b16 %v766
    %v862 = vunpack.c.h.b16 %v766
    %v863 = vunpack.c.l.b16 %v767
    %v864 = vunpack.c.h.b16 %v767
    %v865 = vunpack.c.l.b16 %v768
    %v866 = vunpack.c.h.b16 %v768
    %v867 = vunpack.c.l.b16 %v769
    %v868 = vunpack.c.h.b16 %v769
    %v869 = vunpack.c.l.b16 %v770
    %v870 = vunpack.c.h.b16 %v770
    %v871 = vunpack.c.l.b16 %v771
    %v872 = vunpack.c.h.b16 %v771
    %v873 = vunpack.c.l.b16 %v772
    %v874 = vunpack.c.h.b16 %v772
    %v875 = vunpack.c.l.b16 %v773
    %v876 = vunpack.c.h.b16 %v773
    %v877 = vunpack.c.l.b16 %v774
    %v878 = vunpack.c.h.b16 %v774
    %v879 = vunpack.c.l.b16 %v775
    %v880 = vunpack.c.h.b16 %v775
    %v881 = vunpack.c.l.b16 %v776
    %v882 = vunpack.c.h.b16 %v776
    %v883 = vunpack.c.l.b16 %v777
    %v884 = vunpack.c.h.b16 %v777
    %v885 = vunpack.c.l.b16 %v778
    %v886 = vunpack.c.h.b16 %v778
    %v887 = vunpack.c.l.b16 %v779
    %v888 = vunpack.c.h.b16 %v779
    %v889 = vpack.c.b16 %v827, %v825
    %v890 = vpack.c.b16 %v828, %v826
    %v891 = vpack.c.b16 %v831, %v829
    %v892 = vpack.c.b16 %v832, %v830
    %v893 = vpack.c.b16 %v835, %v833
    %v894 = vpack.c.b16 %v836, %v834
    %v895 = vpack.c.b16 %v839, %v837
    %v896 = vpack.c.b16 %v840, %v838
    %v897 = vpack.c.b16 %v843, %v841
    %v898 = vpack.c.b16 %v844, %v842
    %v899 = vpack.c.b16 %v847, %v845
    %v900 = vpack.c.b16 %v848, %v846
    %v901 = vpack.c.b16 %v851, %v849
    %v902 = vpack.c.b16 %v852, %v850
    %v903 = vpack.c.b16 %v855, %v853
    %v904 = vpack.c.b16 %v856, %v854
    %v905 = vpack.c.b16 %v859, %v857
    %v906 = vpack.c.b16 %v860, %v858
    %v907 = vpack.c.b16 %v863, %v861
    %v908 = vpack.c.b16 %v864, %v862
    %v909 = vpack.c.b16 %v867, %v865
    %v910 = vpack.c.b16 %v868, %v866
    %v911 = vpack.c.b16 %v871, %v869
    %v912 = vpack.c.b16 %v872, %v870
    %v913 = vpack.c.b16 %v875, %v873
    %v914 = vpack.c.b16 %v876, %v874
    %v915 = vpack.c.b16 %v879, %v877
    %v916 = vpack.c.b16 %v880, %v878
    %v917 = vpack.c.b16 %v883, %v881
    %v918 = vpack.c.b16 %v884, %v882
    %v919 = vpack.c.b16 %v887, %v885
    %v920 = vpack.c.b16 %v888, %v886
    %953 = vmatprep.subr.bf16.mxu0 %v904
    %954 = vmatpush1.bf16.msra.mxu0 %v903
    %955 = vmatprep.subr.bf16.mxu0 %v902
    %956 = vmatpush1.bf16.msra.mxu0 %v901
    %957 = vmatprep.subr.bf16.mxu0 %v900
    %958 = vmatpush1.bf16.msra.mxu0 %v899
    %959 = vmatprep.subr.bf16.mxu0 %v898
    %960 = vmatpush1.bf16.msra.mxu0 %v897
    %961 = vmatprep.subr.bf16.mxu0 %v896
    %962 = vmatpush1.bf16.msra.mxu0 %v895
    %963 = vmatprep.subr.bf16.mxu0 %v894
    %964 = vmatpush1.bf16.msra.mxu0 %v893
    %965 = vmatprep.subr.bf16.mxu0 %v892
    %966 = vmatpush1.bf16.msra.mxu0 %v891
    %967 = vmatprep.subr.bf16.mxu0 %v890
    %968 = vmatpush1.bf16.msra.mxu0 %v889
    %969 = vmatprep.subr.bf16.mxu0 %v920
    %970 = vmatpush2.bf16.msra.mxu0 %v919
    %971 = vmatprep.subr.bf16.mxu0 %v918
    %972 = vmatpush2.bf16.msra.mxu0 %v917
    %973 = vmatprep.subr.bf16.mxu0 %v916
    %974 = vmatpush2.bf16.msra.mxu0 %v915
    %975 = vmatprep.subr.bf16.mxu0 %v914
    %976 = vmatpush2.bf16.msra.mxu0 %v913
    %977 = vmatprep.subr.bf16.mxu0 %v912
    %978 = vmatpush2.bf16.msra.mxu0 %v911
    %979 = vmatprep.subr.bf16.mxu0 %v910
    %980 = vmatpush2.bf16.msra.mxu0 %v909
    %981 = vmatprep.subr.bf16.mxu0 %v908
    %982 = vmatpush2.bf16.msra.mxu0 %v907
    %983 = vmatprep.subr.bf16.mxu0 %v906
    %984 = vmatpush2.bf16.msra.mxu0 %v905
    %985 = vmatprep.mubr.bf16.mxu0 %v746
    %986 = vmatmul.mubr.bf16.gmra.mxu0 %v745
    %v987 = vpop.f32.mrf.mxu0
    %v988 = vadd.f32 %v786, %v987
    %v989 = vpop.f32.mrf.mxu0
    %v990 = vadd.f32 %v790, %v989
    %v991 = vpop.f32.mrf.mxu0
    %v992 = vpop.f32.mrf.mxu0
    %993 = vdwg.mxu0
    %v994 = vmul.f32 %v988, 0.01
    %v995 = vmul.f32 %v990, 0.01
    %v996 = vmax.f32 %v988, %v994
    %v997 = vmax.f32 %v990, %v995
    %v998 = vpack.c.bf16 %v996, %v996
    %v999 = vpack.c.bf16 %v997, %v997
    %v1000 = vld [vmem:[#allocation8] sm:$0xf]
    %v1001 = vld [vmem:[#allocation8 + $0x4] sm:$0xf]
    %v1002 = vld [vmem:[#allocation8 + $0x8] sm:$0xf]
    %v1003 = vld [vmem:[#allocation8 + $0xc] sm:$0xf]
    %v1004 = vld [vmem:[#allocation8 + $0x10] sm:$0xf]
    %v1005 = vld [vmem:[#allocation8 + $0x14] sm:$0xf]
    %v1006 = vld [vmem:[#allocation8 + $0x18] sm:$0xf]
    %v1007 = vld [vmem:[#allocation8 + $0x1c] sm:$0xf]
    %v1008 = vld [vmem:[#allocation8 + $0x20] sm:$0xf]
    %v1009 = vld [vmem:[#allocation8 + $0x24] sm:$0xf]
    %v1010 = vld [vmem:[#allocation8 + $0x28] sm:$0xf]
    %v1011 = vld [vmem:[#allocation8 + $0x2c] sm:$0xf]
    %v1012 = vld [vmem:[#allocation8 + $0x30] sm:$0xf]
    %v1013 = vld [vmem:[#allocation8 + $0x34] sm:$0xf]
    %v1014 = vld [vmem:[#allocation8 + $0x38] sm:$0xf]
    %v1015 = vld [vmem:[#allocation8 + $0x3c] sm:$0xf]
    %v1016 = vld [vmem:[#allocation8 + $0x40] sm:$0xf]
    %v1017 = vld [vmem:[#allocation8 + $0x44] sm:$0xf]
    %v1018 = vld [vmem:[#allocation8 + $0x48] sm:$0xf]
    %v1019 = vld [vmem:[#allocation8 + $0x4c] sm:$0xf]
    %v1020 = vld [vmem:[#allocation8 + $0x50] sm:$0xf]
    %v1021 = vld [vmem:[#allocation8 + $0x54] sm:$0xf]
    %v1022 = vld [vmem:[#allocation8 + $0x58] sm:$0xf]
    %v1023 = vld [vmem:[#allocation8 + $0x5c] sm:$0xf]
    %v1024 = vld [vmem:[#allocation8 + $0x60] sm:$0xf]
    %v1025 = vld [vmem:[#allocation8 + $0x64] sm:$0xf]
    %v1026 = vld [vmem:[#allocation8 + $0x68] sm:$0xf]
    %v1027 = vld [vmem:[#allocation8 + $0x6c] sm:$0xf]
    %v1028 = vld [vmem:[#allocation8 + $0x70] sm:$0xf]
    %v1029 = vld [vmem:[#allocation8 + $0x74] sm:$0xf]
    %v1030 = vld [vmem:[#allocation8 + $0x78] sm:$0xf]
    %v1031 = vld [vmem:[#allocation8 + $0x7c] sm:$0xf]
    %v1032 = vld [vmem:[#allocation10 + $0x4] ss:$0 sm:$0xff]
    %v1065 = vunpack.c.l.b16 %v1000
    %v1066 = vunpack.c.l.b16 %v1001
    %v1067 = vunpack.c.l.b16 %v1002
    %v1068 = vunpack.c.l.b16 %v1003
    %v1069 = vunpack.c.l.b16 %v1004
    %v1070 = vunpack.c.l.b16 %v1005
    %v1071 = vunpack.c.l.b16 %v1006
    %v1072 = vunpack.c.l.b16 %v1007
    %v1073 = vunpack.c.l.b16 %v1008
    %v1074 = vunpack.c.l.b16 %v1009
    %v1075 = vunpack.c.l.b16 %v1010
    %v1076 = vunpack.c.l.b16 %v1011
    %v1077 = vunpack.c.l.b16 %v1012
    %v1078 = vunpack.c.l.b16 %v1013
    %v1079 = vunpack.c.l.b16 %v1014
    %v1080 = vunpack.c.l.b16 %v1015
    %v1081 = vunpack.c.l.b16 %v1016
    %v1082 = vunpack.c.l.b16 %v1017
    %v1083 = vunpack.c.l.b16 %v1018
    %v1084 = vunpack.c.l.b16 %v1019
    %v1085 = vunpack.c.l.b16 %v1020
    %v1086 = vunpack.c.l.b16 %v1021
    %v1087 = vunpack.c.l.b16 %v1022
    %v1088 = vunpack.c.l.b16 %v1023
    %v1089 = vunpack.c.l.b16 %v1024
    %v1090 = vunpack.c.l.b16 %v1025
    %v1091 = vunpack.c.l.b16 %v1026
    %v1092 = vunpack.c.l.b16 %v1027
    %v1093 = vunpack.c.l.b16 %v1028
    %v1094 = vunpack.c.l.b16 %v1029
    %v1095 = vunpack.c.l.b16 %v1030
    %v1096 = vunpack.c.l.b16 %v1031
    %v1097 = vpack.c.b16 %v1066, %v1065
    %v1098 = vpack.c.b16 %v1068, %v1067
    %v1099 = vpack.c.b16 %v1070, %v1069
    %v1100 = vpack.c.b16 %v1072, %v1071
    %v1101 = vpack.c.b16 %v1074, %v1073
    %v1102 = vpack.c.b16 %v1076, %v1075
    %v1103 = vpack.c.b16 %v1078, %v1077
    %v1104 = vpack.c.b16 %v1080, %v1079
    %v1105 = vpack.c.b16 %v1082, %v1081
    %v1106 = vpack.c.b16 %v1084, %v1083
    %v1107 = vpack.c.b16 %v1086, %v1085
    %v1108 = vpack.c.b16 %v1088, %v1087
    %v1109 = vpack.c.b16 %v1090, %v1089
    %v1110 = vpack.c.b16 %v1092, %v1091
    %v1111 = vpack.c.b16 %v1094, %v1093
    %v1112 = vpack.c.b16 %v1096, %v1095
    %1129 = vmatprep.subr.bf16.mxu0 0
    %1130 = vmatpush1.bf16.msra.mxu0 %v1104
    %1131 = vmatprep.subr.bf16.mxu0 0
    %1132 = vmatpush1.bf16.msra.mxu0 %v1103
    %1133 = vmatprep.subr.bf16.mxu0 0
    %1134 = vmatpush1.bf16.msra.mxu0 %v1102
    %1135 = vmatprep.subr.bf16.mxu0 0
    %1136 = vmatpush1.bf16.msra.mxu0 %v1101
    %1137 = vmatprep.subr.bf16.mxu0 0
    %1138 = vmatpush1.bf16.msra.mxu0 %v1100
    %1139 = vmatprep.subr.bf16.mxu0 0
    %1140 = vmatpush1.bf16.msra.mxu0 %v1099
    %1141 = vmatprep.subr.bf16.mxu0 0
    %1142 = vmatpush1.bf16.msra.mxu0 %v1098
    %1143 = vmatprep.subr.bf16.mxu0 0
    %1144 = vmatpush1.bf16.msra.mxu0 %v1097
    %1145 = vmatprep.subr.bf16.mxu0 0
    %1146 = vmatpush2.bf16.msra.mxu0 %v1112
    %1147 = vmatprep.subr.bf16.mxu0 0
    %1148 = vmatpush2.bf16.msra.mxu0 %v1111
    %1149 = vmatprep.subr.bf16.mxu0 0
    %1150 = vmatpush2.bf16.msra.mxu0 %v1110
    %1151 = vmatprep.subr.bf16.mxu0 0
    %1152 = vmatpush2.bf16.msra.mxu0 %v1109
    %1153 = vmatprep.subr.bf16.mxu0 0
    %1154 = vmatpush2.bf16.msra.mxu0 %v1108
    %1155 = vmatprep.subr.bf16.mxu0 0
    %1156 = vmatpush2.bf16.msra.mxu0 %v1107
    %1157 = vmatprep.subr.bf16.mxu0 0
    %1158 = vmatpush2.bf16.msra.mxu0 %v1106
    %1159 = vmatprep.subr.bf16.mxu0 0
    %1160 = vmatpush2.bf16.msra.mxu0 %v1105
    %1161 = vmatprep.mubr.bf16.mxu0 %v999
    %1162 = vmatmul.mubr.bf16.gmra.mxu0 %v998
    %v1163 = vpop.f32.mrf.mxu0
    %v1164 = vadd.f32 %v1032, %v1163
    %v1165 = vpop.f32.mrf.mxu0
    %v1166 = vpop.f32.mrf.mxu0
    %v1167 = vpop.f32.mrf.mxu0
    %1168 = vdwg.mxu0
    %1169 = vmax.xlane.f32.xlu0 %v1164
    %v1170 = vpop.xlane.xlu0 %1169
    %v1171 = vsub.f32 %v1164, %v1170
    %v1172 = vmul.f32 %v1171, 1.442695
    %v1173 = vpow.pop %v1172
    %1174 = vadd.xlane.f32.xlu0 %v1173
    %v1175 = vpop.xlane.xlu0 %1174
    %v1176 = vrcp.pop %v1175
    %v1177 = vmul.f32 %v1175, %v1176
    %v1178 = vsub.f32 2.0, %v1177
    %v1179 = vmul.f32 %v1176, %v1178
    %v1180 = vmul.f32 %v1173, %v1179
    %1181 = vst [vmem:[#allocation11] sm:$0xff] %v1180
    // Predicated region
    $region42: #{tpu_custom_call.1} parent=1 // pred_check
      _
    $region43: #{tpu_custom_call.1} parent=1 // pred_check_branch
      %1183 = sbr.rel (0) target = $region45
    $region44: #{tpu_custom_call.1} parent=1 // pred_region
      %s1185 = ssub.s32 128, 128
      %1186 = vsyncadd [#allocation4], %s1185
      %s1188 = sshll.u32 [#allocation11], 4
      %s1189 = int_to_ptr.vmem [resolvable:$true] %s1188
      %1191 = dma.vmem_to_hbm [thread:$0]  %s1189, 128, %s5, [#allocation4]
    $region45: #{tpu_custom_call.1} parent=1 // pred_fallthru
      _
    // Predicated region
    $region46: #{tpu_custom_call.1} parent=1 // pred_check
      _
    $region47: #{tpu_custom_call.1} parent=1 // pred_check_branch
      %1193 = sbr.rel (0) target = $region49
    $region48: #{tpu_custom_call.1} parent=1 // pred_region
      %1194 = dma.done [#allocation4], 128
    $region49: #{tpu_custom_call.1} parent=1 // pred_fallthru
      _
    %1195 = vsyncpa [#allocation3], 1
    %1196 = vsyncpa [#allocation6], 1
    %1197 = vsyncpa [#allocation9], 1
    %1198 = vsyncpa [#allocation4], 1

</llo_original>
